<compile_context>
chip_gen: v5e
topology: v5e:2x2
jax: 0.10.0
libtpu: 0.0.40
codegen_flags: <defaults>
</compile_context>

<pallas_src>
import jax
import jax.numpy as jnp
from jax import lax
from jax.experimental import pallas as pl
from jax.experimental.pallas import tpu as pltpu

K = 9            # conv kernel size
PAD = 4          # 'same' padding
NEG_SLOPE = 0.3  # LeakyReLU slope
BN_EPS = 1e-5
LANES = 128

# TODO(synk): 'speaker' mode (Embedding -> Linear -> LeakyReLU) is not wired
# through the kernel; only the 'emotion' branch (the conv hot path) is here.


def _round_up(x, m):
    return (x + m - 1) // m * m


def init_params(key, count, latent_dim):
    ks = jax.random.split(key, 19)
    p = {}
    p['emb'] = 0.1 * jax.random.normal(ks[0], (count, latent_dim), jnp.float32)
    p['w_lin'] = 0.1 * jax.random.normal(ks[1], (latent_dim, latent_dim), jnp.float32)  # [out, in]
    p['b_lin'] = 0.1 * jax.random.normal(ks[2], (latent_dim,), jnp.float32)
    chans = [(latent_dim, 8), (8, 16), (16, 16), (16, latent_dim)]
    p['convs'] = []
    i = 3
    for cin, cout in chans:
        c = {
            'w': 0.1 * jax.random.normal(ks[i + 0], (cout, cin, K), jnp.float32),  # torch [O, I, K]
            'b': 0.1 * jax.random.normal(ks[i + 1], (cout,), jnp.float32),
            'gamma': 1.0 + 0.1 * jax.random.normal(ks[i + 2], (cout,), jnp.float32),
            'beta': 0.1 * jax.random.normal(ks[i + 3], (cout,), jnp.float32),
            'mean': jnp.zeros((cout,), jnp.float32),   # BN eval-mode running stats
            'var': jnp.ones((cout,), jnp.float32),
        }
        p['convs'].append(c)
        i += 4
    return p


def _pack_weights(params, count, D):
    """Fold Linear into the embedding table and BN into per-layer scale/bias,
    then pack everything into one lane-aligned (rows, 128) f32 slab.
    Returns (slab, static 8-row-aligned offsets, per-layer (Cin, Cout) list)."""
    table = (params['emb'].astype(jnp.float32) @ params['w_lin'].astype(jnp.float32).T
             + params['b_lin'].astype(jnp.float32)[None, :])                  # [count, D]
    sections = [('table', table)]
    chans = []
    for li, c in enumerate(params['convs']):
        cout, cin, k = c['w'].shape
        chans.append((cin, cout))
        # torch [Cout, Cin, K] -> [K, Cin, Cout] -> [K*Cin, Cout] (im2col weight)
        w_mat = jnp.transpose(c['w'], (2, 1, 0)).reshape(k * cin, cout)
        scale = c['gamma'] / jnp.sqrt(c['var'] + BN_EPS)                      # BN fold (eval)
        bias = (c['b'] - c['mean']) * scale + c['beta']                       # conv bias + BN shift
        sections.append((f'w{li}', w_mat))
        sections.append((f'sb{li}', jnp.stack([scale, bias], axis=0)))        # [2, Cout]
    offsets, blocks, off = {}, [], 0
    for name, a in sections:
        rows = _round_up(a.shape[0], 8)
        blk = jnp.zeros((rows, LANES), jnp.float32)
        blk = blk.at[:a.shape[0], :a.shape[1]].set(a.astype(jnp.float32))
        offsets[name] = off
        blocks.append(blk)
        off += rows
    return jnp.concatenate(blocks, axis=0), offsets, chans


def _make_kernel(Bt, S, D, count_pad, chans, offsets, repack_r):
    rows = Bt * S

    def kernel(feats_ref, slab_ref, out_ref, pad_ref):
        # Zero only the halo rows each step (interiors are fully overwritten
        # below for every channel that is read).  Re-zeroing every iteration
        # keeps the kernel correct regardless of how the grid is split across
        # cores.
        pad_ref[:, :PAD, :] = jnp.zeros((Bt, PAD, pad_ref.shape[2]), jnp.float32)
        pad_ref[:, PAD + S:, :] = jnp.zeros((Bt, PAD, pad_ref.shape[2]), jnp.float32)

        # Embedding gather as a one-hot matmul (count is tiny). Linear(D,D) is
        # already folded into the table, so this IS Embedding + Linear.
        feats = feats_ref[...]                                           # (Bt, S, 1) int32
        iota = lax.broadcasted_iota(jnp.int32, (Bt, S, count_pad), 2)
        onehot = (iota == feats).astype(jnp.float32).reshape(rows, count_pad)
        t0 = offsets['table']
        table = slab_ref[t0:t0 + count_pad, :D]
        h = jnp.dot(onehot, table, preferred_element_type=jnp.float32)   # (rows, D)

        # 4x [Conv1d(k=9, pad=4) -> folded BN -> LeakyReLU(0.3)], one im2col
        # matmul per layer over the whole batch tile.
        for li, (cin, cout) in enumerate(chans):
            pad_ref[:, PAD:PAD + S, :cin] = h.reshape(Bt, S, cin)
            xp = pad_ref[:, :, :cin]                                     # (Bt, S+2*PAD, cin)
            cols = jnp.concatenate(
                [xp[:, k:k + S, :] for k in range(K)], axis=-1
            ).reshape(rows, K * cin)                                     # (rows, K*cin)
            w0 = offsets[f'w{li}']
            w_mat = slab_ref[w0:w0 + K * cin, :cout]
            s0 = offsets[f'sb{li}']
            scale = slab_ref[s0:s0 + 1, :cout]
            bias = slab_ref[s0 + 1:s0 + 2, :cout]
            y = jnp.dot(cols, w_mat, preferred_element_type=jnp.float32)
            y = y * scale + bias
            h = jnp.where(y > 0, y, NEG_SLOPE * y)                       # LeakyReLU(0.3)

        # Lane-dense store: pack repack_r consecutive sequence rows into one
        # 128-lane row (matches a contiguous reshape on the HBM side).
        if repack_r > 1:
            h4 = h.reshape(Bt, S // repack_r, repack_r, D)
            packed = jnp.concatenate(
                [h4[:, :, i, :] for i in range(repack_r)], axis=-1)
            out_ref[...] = packed
        else:
            out_ref[...] = h.reshape(Bt, S, D)

    return kernel


def addon_net_emotion(addon_feats, params, max_bt=256):
    B, S = addon_feats.shape
    count, D = params['emb'].shape

    slab, offsets, chans = _pack_weights(params, count, D)
    count_pad = _round_up(count, 8)
    cmax = max(cin for cin, _ in chans)

    # Batch tiling: pad the batch up to a multiple of the tile (padded rows use
    # index 0, a valid embedding index; they are sliced off afterwards).
    Bt = min(B, max_bt)
    B_pad = _round_up(B, Bt)
    grid = (B_pad // Bt,)

    feats3 = addon_feats.astype(jnp.int32)[..., None]                    # (B, S, 1)
    if B_pad != B:
        feats3 = jnp.pad(feats3, ((0, B_pad - B), (0, 0), (0, 0)))

    # Lane-dense output view: [B, S, D] == [B, S//r, r*D] contiguously.
    if D <= LANES and LANES % D == 0 and S % (LANES // D) == 0:
        r = LANES // D
    else:
        r = 1

    kernel = _make_kernel(Bt, S, D, count_pad, chans, offsets, r)

    out = pl.pallas_call(
        kernel,
        out_shape=jax.ShapeDtypeStruct((B_pad, S // r, r * D), jnp.float32),
        grid=grid,
        in_specs=[
            pl.BlockSpec((Bt, S, 1), lambda b: (b, 0, 0)),
            pl.BlockSpec(slab.shape, lambda b: (0, 0)),   # packed weight slab, resident
        ],
        out_specs=pl.BlockSpec((Bt, S // r, r * D), lambda b: (b, 0, 0)),
        scratch_shapes=[pltpu.VMEM((Bt, S + 2 * PAD, cmax), jnp.float32)],
        compiler_params=pltpu.CompilerParams(dimension_semantics=("parallel",)),
    )(feats3, slab)
    return out.reshape(B_pad, S, D)[:B]


def ref_forward(addon_feats, params):
    """Pure-JAX reference mirroring the PyTorch forward (eval-mode BN)."""
    x = params['emb'][addon_feats]
    x = x @ params['w_lin'].T + params['b_lin']
    h = jnp.transpose(x, (0, 2, 1))                          # NCL
    for c in params['convs']:
        y = lax.conv_general_dilated(
            h, c['w'], window_strides=(1,), padding=[(PAD, PAD)],
            dimension_numbers=('NCH', 'OIH', 'NCH'))
        scale = c['gamma'] / jnp.sqrt(c['var'] + BN_EPS)
        bias = (c['b'] - c['mean']) * scale + c['beta']
        y = y * scale[None, :, None] + bias[None, :, None]
        h = jnp.where(y > 0, y, NEG_SLOPE * y)
    return jnp.transpose(h, (0, 2, 1))                       # back to [B, S, D]


if __name__ == "__main__":
    cfg = {'cond_mode': {'emotion': {'count': 10, 'latent_dim': 32}}}
    count = cfg['cond_mode']['emotion']['count']
    latent_dim = cfg['cond_mode']['emotion']['latent_dim']

    key = jax.random.PRNGKey(0)
    kp, kx1, kx2 = jax.random.split(key, 3)
    params = init_params(kp, count, latent_dim)

    # Case 1: tiny batch, whole batch in one grid step.
    B, S = 2, 8
    feats = jax.random.randint(kx1, (B, S), 0, count, dtype=jnp.int32)
    out = jax.block_until_ready(addon_net_emotion(feats, params))
    ref = ref_forward(feats, params)
    assert out.shape == (B, S, latent_dim)
    err = float(jnp.max(jnp.abs(out - ref)))
    assert jnp.allclose(out, ref, rtol=1e-4, atol=1e-4), err

    # Case 2: batch tiling with a multi-step grid (Bt < B) and batch padding
    # (B not a multiple of the tile).
    B2 = 7
    feats2 = jax.random.randint(kx2, (B2, S), 0, count, dtype=jnp.int32)
    out2 = jax.block_until_ready(addon_net_emotion(feats2, params, max_bt=4))
    ref2 = ref_forward(feats2, params)
    err2 = float(jnp.max(jnp.abs(out2 - ref2)))
    assert jnp.allclose(out2, ref2, rtol=1e-4, atol=1e-4), err2

    print("KERNEL_OK")
</pallas_src>

<mosaic_0001>
module attributes {stable_mosaic.version = 11 : i64} {
  func.func @kernel(%arg0: i32, %arg1: memref<2x8x1xi32, #tpu.memory_space<vmem>>, %arg2: memref<696x128xf32, #tpu.memory_space<vmem>>, %arg3: memref<2x2x128xf32, #tpu.memory_space<vmem>>, %arg4: memref<2x16x32xf32, #tpu.memory_space<vmem>>) attributes {dimension_semantics = [#tpu.dimension_semantics<parallel>], iteration_bounds = array<i64: 1>, scalar_prefetch = 0 : i64, scratch_operands = 1 : i64, tpu.core_type = #tpu.core_type<tc>, window_params = [{transform_indices = @transform_0, window_bounds = array<i64: 2, 8, 1>}, {pipeline_mode = #tpu.pipeline_mode<synchronous>, transform_indices = @transform_1, window_bounds = array<i64: 696, 128>}, {transform_indices = @transform_2, window_bounds = array<i64: 2, 2, 128>}]} {
    %cst = arith.constant 0.000000e+00 : f32
    %0 = vector.broadcast %cst : f32 to vector<2x4x32xf32>
    %c0 = arith.constant 0 : index
    %c0_0 = arith.constant 0 : index
    %c0_1 = arith.constant 0 : index
    %1 = vector.load %arg4[%c0, %c0_0, %c0_1] : memref<2x16x32xf32, #tpu.memory_space<vmem>>, vector<2x4x32xf32>
    tpu.vector_store %arg4[%c0, %c0_0, %c0_1], %0 {strides = array<i32>} : memref<2x16x32xf32, #tpu.memory_space<vmem>>, vector<2x4x32xf32>,
    %cst_2 = arith.constant 0.000000e+00 : f32
    %2 = vector.broadcast %cst_2 : f32 to vector<2x4x32xf32>
    %c0_3 = arith.constant 0 : index
    %c12 = arith.constant 12 : index
    %c0_4 = arith.constant 0 : index
    %3 = vector.load %arg4[%c0_3, %c12, %c0_4] : memref<2x16x32xf32, #tpu.memory_space<vmem>>, vector<2x4x32xf32>
    tpu.vector_store %arg4[%c0_3, %c12, %c0_4], %2 {strides = array<i32>} : memref<2x16x32xf32, #tpu.memory_space<vmem>>, vector<2x4x32xf32>,
    %c0_5 = arith.constant 0 : index
    %c0_6 = arith.constant 0 : index
    %c0_7 = arith.constant 0 : index
    %4 = vector.load %arg1[%c0_5, %c0_6, %c0_7] : memref<2x8x1xi32, #tpu.memory_space<vmem>>, vector<2x8x1xi32>
    %5 = tpu.iota {dimensions = array<i32: 2>} : vector<2x8x16xi32>
    %6 = vector.broadcast %4 : vector<2x8x1xi32> to vector<2x8x16xi32>
    %7 = arith.cmpi eq, %5, %6 : vector<2x8x16xi32>
    %8 = arith.extui %7 : vector<2x8x16xi1> to vector<2x8x16xi32>
    %9 = arith.sitofp %8 : vector<2x8x16xi32> to vector<2x8x16xf32>
    %10 = vector.shape_cast %9 : vector<2x8x16xf32> to vector<16x16xf32>
    %c0_8 = arith.constant 0 : index
    %c0_9 = arith.constant 0 : index
    %11 = vector.load %arg2[%c0_8, %c0_9] : memref<696x128xf32, #tpu.memory_space<vmem>>, vector<16x32xf32>
    %cst_10 = arith.constant dense<0.000000e+00> : vector<16x32xf32>
    %12 = tpu.matmul %10, %11, %cst_10 {dimension_numbers = #tpu.dot_dimension_numbers<[1], [0], [0], [1], [0, 0, 1, 1], [], []>} : vector<16x16xf32>, vector<16x32xf32>, vector<16x32xf32> -> vector<16x32xf32>
    %13 = vector.shape_cast %12 : vector<16x32xf32> to vector<2x8x32xf32>
    %c0_11 = arith.constant 0 : index
    %c4 = arith.constant 4 : index
    %c0_12 = arith.constant 0 : index
    %14 = vector.load %arg4[%c0_11, %c4, %c0_12] : memref<2x16x32xf32, #tpu.memory_space<vmem>>, vector<2x8x32xf32>
    tpu.vector_store %arg4[%c0_11, %c4, %c0_12], %13 {strides = array<i32>} : memref<2x16x32xf32, #tpu.memory_space<vmem>>, vector<2x8x32xf32>,
    %c0_13 = arith.constant 0 : index
    %c0_14 = arith.constant 0 : index
    %c0_15 = arith.constant 0 : index
    %15 = vector.load %arg4[%c0_13, %c0_14, %c0_15] : memref<2x16x32xf32, #tpu.memory_space<vmem>>, vector<2x16x32xf32>
    %16 = vector.extract_strided_slice %15 {offsets = [0, 0, 0], sizes = [2, 8, 32], strides = [1, 1, 1]} : vector<2x16x32xf32> to vector<2x8x32xf32>
    %17 = vector.extract_strided_slice %15 {offsets = [0, 1, 0], sizes = [2, 8, 32], strides = [1, 1, 1]} : vector<2x16x32xf32> to vector<2x8x32xf32>
    %18 = vector.extract_strided_slice %15 {offsets = [0, 2, 0], sizes = [2, 8, 32], strides = [1, 1, 1]} : vector<2x16x32xf32> to vector<2x8x32xf32>
    %19 = vector.extract_strided_slice %15 {offsets = [0, 3, 0], sizes = [2, 8, 32], strides = [1, 1, 1]} : vector<2x16x32xf32> to vector<2x8x32xf32>
    %20 = vector.extract_strided_slice %15 {offsets = [0, 4, 0], sizes = [2, 8, 32], strides = [1, 1, 1]} : vector<2x16x32xf32> to vector<2x8x32xf32>
    %21 = vector.extract_strided_slice %15 {offsets = [0, 5, 0], sizes = [2, 8, 32], strides = [1, 1, 1]} : vector<2x16x32xf32> to vector<2x8x32xf32>
    %22 = vector.extract_strided_slice %15 {offsets = [0, 6, 0], sizes = [2, 8, 32], strides = [1, 1, 1]} : vector<2x16x32xf32> to vector<2x8x32xf32>
    %23 = vector.extract_strided_slice %15 {offsets = [0, 7, 0], sizes = [2, 8, 32], strides = [1, 1, 1]} : vector<2x16x32xf32> to vector<2x8x32xf32>
    %24 = vector.extract_strided_slice %15 {offsets = [0, 8, 0], sizes = [2, 8, 32], strides = [1, 1, 1]} : vector<2x16x32xf32> to vector<2x8x32xf32>
    %25 = tpu.concatenate %16, %17, %18, %19, %20, %21, %22, %23, %24 in 2 : vector<2x8x32xf32>, vector<2x8x32xf32>, vector<2x8x32xf32>, vector<2x8x32xf32>, vector<2x8x32xf32>, vector<2x8x32xf32>, vector<2x8x32xf32>, vector<2x8x32xf32>, vector<2x8x32xf32> -> vector<2x8x288xf32>
    %26 = vector.shape_cast %25 : vector<2x8x288xf32> to vector<16x288xf32>
    %c16 = arith.constant 16 : index
    %c0_16 = arith.constant 0 : index
    %27 = vector.load %arg2[%c16, %c0_16] : memref<696x128xf32, #tpu.memory_space<vmem>>, vector<288x8xf32>
    %c304 = arith.constant 304 : index
    %c0_17 = arith.constant 0 : index
    %28 = vector.load %arg2[%c304, %c0_17] : memref<696x128xf32, #tpu.memory_space<vmem>>, vector<1x8xf32>
    %c305 = arith.constant 305 : index
    %c0_18 = arith.constant 0 : index
    %29 = vector.load %arg2[%c305, %c0_18] : memref<696x128xf32, #tpu.memory_space<vmem>>, vector<1x8xf32>
    %cst_19 = arith.constant dense<0.000000e+00> : vector<16x8xf32>
    %30 = tpu.matmul %26, %27, %cst_19 {dimension_numbers = #tpu.dot_dimension_numbers<[1], [0], [0], [1], [0, 0, 1, 1], [], []>} : vector<16x288xf32>, vector<288x8xf32>, vector<16x8xf32> -> vector<16x8xf32>
    %31 = vector.broadcast %28 : vector<1x8xf32> to vector<16x8xf32>
    %32 = arith.mulf %30, %31 : vector<16x8xf32>
    %33 = vector.broadcast %29 : vector<1x8xf32> to vector<16x8xf32>
    %34 = arith.addf %32, %33 : vector<16x8xf32>
    %cst_20 = arith.constant 0.000000e+00 : f32
    %35 = vector.broadcast %cst_20 : f32 to vector<16x8xf32>
    %36 = arith.cmpf ogt, %34, %35 : vector<16x8xf32>
    %cst_21 = arith.constant 3.000000e-01 : f32
    %37 = vector.broadcast %cst_21 : f32 to vector<16x8xf32>
    %38 = arith.mulf %37, %34 : vector<16x8xf32>
    %39 = arith.select %36, %34, %38 : vector<16x8xi1>, vector<16x8xf32>
    %40 = vector.shape_cast %39 : vector<16x8xf32> to vector<2x8x8xf32>
    %c0_22 = arith.constant 0 : index
    %c4_23 = arith.constant 4 : index
    %c0_24 = arith.constant 0 : index
    %41 = vector.load %arg4[%c0_22, %c4_23, %c0_24] : memref<2x16x32xf32, #tpu.memory_space<vmem>>, vector<2x8x8xf32>
    tpu.vector_store %arg4[%c0_22, %c4_23, %c0_24], %40 {strides = array<i32>} : memref<2x16x32xf32, #tpu.memory_space<vmem>>, vector<2x8x8xf32>,
    %c0_25 = arith.constant 0 : index
    %c0_26 = arith.constant 0 : index
    %c0_27 = arith.constant 0 : index
    %42 = vector.load %arg4[%c0_25, %c0_26, %c0_27] : memref<2x16x32xf32, #tpu.memory_space<vmem>>, vector<2x16x8xf32>
    %43 = vector.extract_strided_slice %42 {offsets = [0, 0, 0], sizes = [2, 8, 8], strides = [1, 1, 1]} : vector<2x16x8xf32> to vector<2x8x8xf32>
    %44 = vector.extract_strided_slice %42 {offsets = [0, 1, 0], sizes = [2, 8, 8], strides = [1, 1, 1]} : vector<2x16x8xf32> to vector<2x8x8xf32>
    %45 = vector.extract_strided_slice %42 {offsets = [0, 2, 0], sizes = [2, 8, 8], strides = [1, 1, 1]} : vector<2x16x8xf32> to vector<2x8x8xf32>
    %46 = vector.extract_strided_slice %42 {offsets = [0, 3, 0], sizes = [2, 8, 8], strides = [1, 1, 1]} : vector<2x16x8xf32> to vector<2x8x8xf32>
    %47 = vector.extract_strided_slice %42 {offsets = [0, 4, 0], sizes = [2, 8, 8], strides = [1, 1, 1]} : vector<2x16x8xf32> to vector<2x8x8xf32>
    %48 = vector.extract_strided_slice %42 {offsets = [0, 5, 0], sizes = [2, 8, 8], strides = [1, 1, 1]} : vector<2x16x8xf32> to vector<2x8x8xf32>
    %49 = vector.extract_strided_slice %42 {offsets = [0, 6, 0], sizes = [2, 8, 8], strides = [1, 1, 1]} : vector<2x16x8xf32> to vector<2x8x8xf32>
    %50 = vector.extract_strided_slice %42 {offsets = [0, 7, 0], sizes = [2, 8, 8], strides = [1, 1, 1]} : vector<2x16x8xf32> to vector<2x8x8xf32>
    %51 = vector.extract_strided_slice %42 {offsets = [0, 8, 0], sizes = [2, 8, 8], strides = [1, 1, 1]} : vector<2x16x8xf32> to vector<2x8x8xf32>
    %52 = tpu.concatenate %43, %44, %45, %46, %47, %48, %49, %50, %51 in 2 : vector<2x8x8xf32>, vector<2x8x8xf32>, vector<2x8x8xf32>, vector<2x8x8xf32>, vector<2x8x8xf32>, vector<2x8x8xf32>, vector<2x8x8xf32>, vector<2x8x8xf32>, vector<2x8x8xf32> -> vector<2x8x72xf32>
    %53 = vector.shape_cast %52 : vector<2x8x72xf32> to vector<16x72xf32>
    %c312 = arith.constant 312 : index
    %c0_28 = arith.constant 0 : index
    %54 = vector.load %arg2[%c312, %c0_28] : memref<696x128xf32, #tpu.memory_space<vmem>>, vector<72x16xf32>
    %c384 = arith.constant 384 : index
    %c0_29 = arith.constant 0 : index
    %55 = vector.load %arg2[%c384, %c0_29] : memref<696x128xf32, #tpu.memory_space<vmem>>, vector<1x16xf32>
    %c385 = arith.constant 385 : index
    %c0_30 = arith.constant 0 : index
    %56 = vector.load %arg2[%c385, %c0_30] : memref<696x128xf32, #tpu.memory_space<vmem>>, vector<1x16xf32>
    %cst_31 = arith.constant dense<0.000000e+00> : vector<16x16xf32>
    %57 = tpu.matmul %53, %54, %cst_31 {dimension_numbers = #tpu.dot_dimension_numbers<[1], [0], [0], [1], [0, 0, 1, 1], [], []>} : vector<16x72xf32>, vector<72x16xf32>, vector<16x16xf32> -> vector<16x16xf32>
    %58 = vector.broadcast %55 : vector<1x16xf32> to vector<16x16xf32>
    %59 = arith.mulf %57, %58 : vector<16x16xf32>
    %60 = vector.broadcast %56 : vector<1x16xf32> to vector<16x16xf32>
    %61 = arith.addf %59, %60 : vector<16x16xf32>
    %cst_32 = arith.constant 0.000000e+00 : f32
    %62 = vector.broadcast %cst_32 : f32 to vector<16x16xf32>
    %63 = arith.cmpf ogt, %61, %62 : vector<16x16xf32>
    %cst_33 = arith.constant 3.000000e-01 : f32
    %64 = vector.broadcast %cst_33 : f32 to vector<16x16xf32>
    %65 = arith.mulf %64, %61 : vector<16x16xf32>
    %66 = arith.select %63, %61, %65 : vector<16x16xi1>, vector<16x16xf32>
    %67 = vector.shape_cast %66 : vector<16x16xf32> to vector<2x8x16xf32>
    %c0_34 = arith.constant 0 : index
    %c4_35 = arith.constant 4 : index
    %c0_36 = arith.constant 0 : index
    %68 = vector.load %arg4[%c0_34, %c4_35, %c0_36] : memref<2x16x32xf32, #tpu.memory_space<vmem>>, vector<2x8x16xf32>
    tpu.vector_store %arg4[%c0_34, %c4_35, %c0_36], %67 {strides = array<i32>} : memref<2x16x32xf32, #tpu.memory_space<vmem>>, vector<2x8x16xf32>,
    %c0_37 = arith.constant 0 : index
    %c0_38 = arith.constant 0 : index
    %c0_39 = arith.constant 0 : index
    %69 = vector.load %arg4[%c0_37, %c0_38, %c0_39] : memref<2x16x32xf32, #tpu.memory_space<vmem>>, vector<2x16x16xf32>
    %70 = vector.extract_strided_slice %69 {offsets = [0, 0, 0], sizes = [2, 8, 16], strides = [1, 1, 1]} : vector<2x16x16xf32> to vector<2x8x16xf32>
    %71 = vector.extract_strided_slice %69 {offsets = [0, 1, 0], sizes = [2, 8, 16], strides = [1, 1, 1]} : vector<2x16x16xf32> to vector<2x8x16xf32>
    %72 = vector.extract_strided_slice %69 {offsets = [0, 2, 0], sizes = [2, 8, 16], strides = [1, 1, 1]} : vector<2x16x16xf32> to vector<2x8x16xf32>
    %73 = vector.extract_strided_slice %69 {offsets = [0, 3, 0], sizes = [2, 8, 16], strides = [1, 1, 1]} : vector<2x16x16xf32> to vector<2x8x16xf32>
    %74 = vector.extract_strided_slice %69 {offsets = [0, 4, 0], sizes = [2, 8, 16], strides = [1, 1, 1]} : vector<2x16x16xf32> to vector<2x8x16xf32>
    %75 = vector.extract_strided_slice %69 {offsets = [0, 5, 0], sizes = [2, 8, 16], strides = [1, 1, 1]} : vector<2x16x16xf32> to vector<2x8x16xf32>
    %76 = vector.extract_strided_slice %69 {offsets = [0, 6, 0], sizes = [2, 8, 16], strides = [1, 1, 1]} : vector<2x16x16xf32> to vector<2x8x16xf32>
    %77 = vector.extract_strided_slice %69 {offsets = [0, 7, 0], sizes = [2, 8, 16], strides = [1, 1, 1]} : vector<2x16x16xf32> to vector<2x8x16xf32>
    %78 = vector.extract_strided_slice %69 {offsets = [0, 8, 0], sizes = [2, 8, 16], strides = [1, 1, 1]} : vector<2x16x16xf32> to vector<2x8x16xf32>
    %79 = tpu.concatenate %70, %71, %72, %73, %74, %75, %76, %77, %78 in 2 : vector<2x8x16xf32>, vector<2x8x16xf32>, vector<2x8x16xf32>, vector<2x8x16xf32>, vector<2x8x16xf32>, vector<2x8x16xf32>, vector<2x8x16xf32>, vector<2x8x16xf32>, vector<2x8x16xf32> -> vector<2x8x144xf32>
    %80 = vector.shape_cast %79 : vector<2x8x144xf32> to vector<16x144xf32>
    %c392 = arith.constant 392 : index
    %c0_40 = arith.constant 0 : index
    %81 = vector.load %arg2[%c392, %c0_40] : memref<696x128xf32, #tpu.memory_space<vmem>>, vector<144x16xf32>
    %c536 = arith.constant 536 : index
    %c0_41 = arith.constant 0 : index
    %82 = vector.load %arg2[%c536, %c0_41] : memref<696x128xf32, #tpu.memory_space<vmem>>, vector<1x16xf32>
    %c537 = arith.constant 537 : index
    %c0_42 = arith.constant 0 : index
    %83 = vector.load %arg2[%c537, %c0_42] : memref<696x128xf32, #tpu.memory_space<vmem>>, vector<1x16xf32>
    %cst_43 = arith.constant dense<0.000000e+00> : vector<16x16xf32>
    %84 = tpu.matmul %80, %81, %cst_43 {dimension_numbers = #tpu.dot_dimension_numbers<[1], [0], [0], [1], [0, 0, 1, 1], [], []>} : vector<16x144xf32>, vector<144x16xf32>, vector<16x16xf32> -> vector<16x16xf32>
    %85 = vector.broadcast %82 : vector<1x16xf32> to vector<16x16xf32>
    %86 = arith.mulf %84, %85 : vector<16x16xf32>
    %87 = vector.broadcast %83 : vector<1x16xf32> to vector<16x16xf32>
    %88 = arith.addf %86, %87 : vector<16x16xf32>
    %cst_44 = arith.constant 0.000000e+00 : f32
    %89 = vector.broadcast %cst_44 : f32 to vector<16x16xf32>
    %90 = arith.cmpf ogt, %88, %89 : vector<16x16xf32>
    %cst_45 = arith.constant 3.000000e-01 : f32
    %91 = vector.broadcast %cst_45 : f32 to vector<16x16xf32>
    %92 = arith.mulf %91, %88 : vector<16x16xf32>
    %93 = arith.select %90, %88, %92 : vector<16x16xi1>, vector<16x16xf32>
    %94 = vector.shape_cast %93 : vector<16x16xf32> to vector<2x8x16xf32>
    %c0_46 = arith.constant 0 : index
    %c4_47 = arith.constant 4 : index
    %c0_48 = arith.constant 0 : index
    %95 = vector.load %arg4[%c0_46, %c4_47, %c0_48] : memref<2x16x32xf32, #tpu.memory_space<vmem>>, vector<2x8x16xf32>
    tpu.vector_store %arg4[%c0_46, %c4_47, %c0_48], %94 {strides = array<i32>} : memref<2x16x32xf32, #tpu.memory_space<vmem>>, vector<2x8x16xf32>,
    %c0_49 = arith.constant 0 : index
    %c0_50 = arith.constant 0 : index
    %c0_51 = arith.constant 0 : index
    %96 = vector.load %arg4[%c0_49, %c0_50, %c0_51] : memref<2x16x32xf32, #tpu.memory_space<vmem>>, vector<2x16x16xf32>
    %97 = vector.extract_strided_slice %96 {offsets = [0, 0, 0], sizes = [2, 8, 16], strides = [1, 1, 1]} : vector<2x16x16xf32> to vector<2x8x16xf32>
    %98 = vector.extract_strided_slice %96 {offsets = [0, 1, 0], sizes = [2, 8, 16], strides = [1, 1, 1]} : vector<2x16x16xf32> to vector<2x8x16xf32>
    %99 = vector.extract_strided_slice %96 {offsets = [0, 2, 0], sizes = [2, 8, 16], strides = [1, 1, 1]} : vector<2x16x16xf32> to vector<2x8x16xf32>
    %100 = vector.extract_strided_slice %96 {offsets = [0, 3, 0], sizes = [2, 8, 16], strides = [1, 1, 1]} : vector<2x16x16xf32> to vector<2x8x16xf32>
    %101 = vector.extract_strided_slice %96 {offsets = [0, 4, 0], sizes = [2, 8, 16], strides = [1, 1, 1]} : vector<2x16x16xf32> to vector<2x8x16xf32>
    %102 = vector.extract_strided_slice %96 {offsets = [0, 5, 0], sizes = [2, 8, 16], strides = [1, 1, 1]} : vector<2x16x16xf32> to vector<2x8x16xf32>
    %103 = vector.extract_strided_slice %96 {offsets = [0, 6, 0], sizes = [2, 8, 16], strides = [1, 1, 1]} : vector<2x16x16xf32> to vector<2x8x16xf32>
    %104 = vector.extract_strided_slice %96 {offsets = [0, 7, 0], sizes = [2, 8, 16], strides = [1, 1, 1]} : vector<2x16x16xf32> to vector<2x8x16xf32>
    %105 = vector.extract_strided_slice %96 {offsets = [0, 8, 0], sizes = [2, 8, 16], strides = [1, 1, 1]} : vector<2x16x16xf32> to vector<2x8x16xf32>
    %106 = tpu.concatenate %97, %98, %99, %100, %101, %102, %103, %104, %105 in 2 : vector<2x8x16xf32>, vector<2x8x16xf32>, vector<2x8x16xf32>, vector<2x8x16xf32>, vector<2x8x16xf32>, vector<2x8x16xf32>, vector<2x8x16xf32>, vector<2x8x16xf32>, vector<2x8x16xf32> -> vector<2x8x144xf32>
    %107 = vector.shape_cast %106 : vector<2x8x144xf32> to vector<16x144xf32>
    %c544 = arith.constant 544 : index
    %c0_52 = arith.constant 0 : index
    %108 = vector.load %arg2[%c544, %c0_52] : memref<696x128xf32, #tpu.memory_space<vmem>>, vector<144x32xf32>
    %c688 = arith.constant 688 : index
    %c0_53 = arith.constant 0 : index
    %109 = vector.load %arg2[%c688, %c0_53] : memref<696x128xf32, #tpu.memory_space<vmem>>, vector<1x32xf32>
    %c689 = arith.constant 689 : index
    %c0_54 = arith.constant 0 : index
    %110 = vector.load %arg2[%c689, %c0_54] : memref<696x128xf32, #tpu.memory_space<vmem>>, vector<1x32xf32>
    %cst_55 = arith.constant dense<0.000000e+00> : vector<16x32xf32>
    %111 = tpu.matmul %107, %108, %cst_55 {dimension_numbers = #tpu.dot_dimension_numbers<[1], [0], [0], [1], [0, 0, 1, 1], [], []>} : vector<16x144xf32>, vector<144x32xf32>, vector<16x32xf32> -> vector<16x32xf32>
    %112 = vector.broadcast %109 : vector<1x32xf32> to vector<16x32xf32>
    %113 = arith.mulf %111, %112 : vector<16x32xf32>
    %114 = vector.broadcast %110 : vector<1x32xf32> to vector<16x32xf32>
    %115 = arith.addf %113, %114 : vector<16x32xf32>
    %cst_56 = arith.constant 0.000000e+00 : f32
    %116 = vector.broadcast %cst_56 : f32 to vector<16x32xf32>
    %117 = arith.cmpf ogt, %115, %116 : vector<16x32xf32>
    %cst_57 = arith.constant 3.000000e-01 : f32
    %118 = vector.broadcast %cst_57 : f32 to vector<16x32xf32>
    %119 = arith.mulf %118, %115 : vector<16x32xf32>
    %120 = arith.select %117, %115, %119 : vector<16x32xi1>, vector<16x32xf32>
    %121 = vector.shape_cast %120 : vector<16x32xf32> to vector<2x2x4x32xf32>
    %122 = vector.extract_strided_slice %121 {offsets = [0, 0, 0, 0], sizes = [2, 2, 1, 32], strides = [1, 1, 1, 1]} : vector<2x2x4x32xf32> to vector<2x2x1x32xf32>
    %123 = vector.shape_cast %122 : vector<2x2x1x32xf32> to vector<2x2x32xf32>
    %124 = vector.extract_strided_slice %121 {offsets = [0, 0, 1, 0], sizes = [2, 2, 1, 32], strides = [1, 1, 1, 1]} : vector<2x2x4x32xf32> to vector<2x2x1x32xf32>
    %125 = vector.shape_cast %124 : vector<2x2x1x32xf32> to vector<2x2x32xf32>
    %126 = vector.extract_strided_slice %121 {offsets = [0, 0, 2, 0], sizes = [2, 2, 1, 32], strides = [1, 1, 1, 1]} : vector<2x2x4x32xf32> to vector<2x2x1x32xf32>
    %127 = vector.shape_cast %126 : vector<2x2x1x32xf32> to vector<2x2x32xf32>
    %128 = vector.extract_strided_slice %121 {offsets = [0, 0, 3, 0], sizes = [2, 2, 1, 32], strides = [1, 1, 1, 1]} : vector<2x2x4x32xf32> to vector<2x2x1x32xf32>
    %129 = vector.shape_cast %128 : vector<2x2x1x32xf32> to vector<2x2x32xf32>
    %130 = tpu.concatenate %123, %125, %127, %129 in 2 : vector<2x2x32xf32>, vector<2x2x32xf32>, vector<2x2x32xf32>, vector<2x2x32xf32> -> vector<2x2x128xf32>
    %c0_58 = arith.constant 0 : index
    %c0_59 = arith.constant 0 : index
    %c0_60 = arith.constant 0 : index
    %131 = vector.load %arg3[%c0_58, %c0_59, %c0_60] : memref<2x2x128xf32, #tpu.memory_space<vmem>>, vector<2x2x128xf32>
    tpu.vector_store %arg3[%c0_58, %c0_59, %c0_60], %130 {strides = array<i32>} : memref<2x2x128xf32, #tpu.memory_space<vmem>>, vector<2x2x128xf32>,
    return
  }
  func.func @transform_0(%arg0: i32) -> (i32, i32, i32) {
    %c0_i32 = arith.constant 0 : i32
    %c0_i32_0 = arith.constant 0 : i32
    %c0_i32_1 = arith.constant 0 : i32
    return %arg0, %c0_i32, %c0_i32_0 : i32, i32, i32
  }
  func.func @transform_1(%arg0: i32) -> (i32, i32) {
    %c0_i32 = arith.constant 0 : i32
    %c0_i32_0 = arith.constant 0 : i32
    %c0_i32_1 = arith.constant 0 : i32
    return %c0_i32, %c0_i32_0 : i32, i32
  }
  func.func @transform_2(%arg0: i32) -> (i32, i32, i32) {
    %c0_i32 = arith.constant 0 : i32
    %c0_i32_0 = arith.constant 0 : i32
    %c0_i32_1 = arith.constant 0 : i32
    return %arg0, %c0_i32, %c0_i32_0 : i32, i32, i32
  }
}

</mosaic_0001>

<llo_original>
// kernel: tpu_custom_call.1
$region0: #{tpu_custom_call.1}
  #allocation0 [shape = 'u32[]', space=smem, size = 0x4, offset = 0x4, fixed_abs, tag = 'smem constant byte address 0x4 - core index']
  #allocation1 [shape = 'u32[72,128]{1,0:T(1,128)}', space=vmem, size = 0x9000, scoped, tag = 'internal scratch']
  #allocation2 [shape = 'f32[2,16,32]{2,1,0:T(8,128)}', space=vmem, size = 0x4000, scoped, tag = 'scratch operand']
  %s0 = inlined_call_operand.vmem [shape: s32[2,8,1], index: 0, kind: input, shape index: {}]
  %s1 = inlined_call_operand.hbm [shape: f32[696,128], index: 1, kind: input, shape index: {}]
  %s2 = inlined_call_operand.hbm [shape: f32[2,2,128], index: 2, kind: output, shape index: {}]
  %s3 = sld [smem:[#allocation0]]
  $region22: #{tpu_custom_call.1} parent=0
    _
  %s5 = ssub.s32 1, %s3
  %s6 = scalar_select 0, %s5, %s3
  $region1: #{tpu_custom_call.1} parent=0
    #allocation3 [shape = 'u8[356352]{0}', space=vmem, size = 0x57000, scoped, tag = 'input window, operand 1, single buffered']
    #allocation4 [shape = 's32[1]{0}', space=sflag, size = 0x4, scoped, tag = 'scoped memory for tpu_custom_call.1']
    #allocation5 [shape = 's32[1]{0}', space=sflag, size = 0x4, scoped, tag = 'scoped memory for tpu_custom_call.1']
    #allocation6 [shape = 'u8[2048]{0}', space=vmem, size = 0x800, scoped, tag = 'output window, operand 0, single buffered']
    %7 = vsyncpa [#allocation4], 0
    %8 = vsyncpa [#allocation5], 0
    // Predicated region
    $region2: #{tpu_custom_call.1} parent=1 // pred_check
      _
    $region3: #{tpu_custom_call.1} parent=1 // pred_check_branch
      %10 = sbr.rel (0) target = $region5
    $region4: #{tpu_custom_call.1} parent=1 // pred_region
      _
    $region5: #{tpu_custom_call.1} parent=1 // pred_fallthru
      _
    // Predicated region
    $region6: #{tpu_custom_call.1} parent=1 // pred_check
      _
    $region7: #{tpu_custom_call.1} parent=1 // pred_check_branch
      %12 = sbr.rel (0) target = $region9
    $region8: #{tpu_custom_call.1} parent=1 // pred_region
      %14 = vsyncadd [#allocation4], 0
      %s15 = sshll.u32 %s1, 4
      %s16 = int_to_ptr.hbm [resolvable:$true] %s15
      %s17 = sshll.u32 [#allocation3], 4
      %s18 = int_to_ptr.vmem [resolvable:$true] %s17
      %23 = dma.hbm_to_vmem [thread:$0]  %s16, 11136, %s18, [#allocation4], 128, 128, 8
    $region9: #{tpu_custom_call.1} parent=1 // pred_fallthru
      _
    // Predicated region
    $region10: #{tpu_custom_call.1} parent=1 // pred_check
      _
    $region11: #{tpu_custom_call.1} parent=1 // pred_check_branch
      %25 = sbr.rel (0) target = $region13
    $region12: #{tpu_custom_call.1} parent=1 // pred_region
      %27 = dma.done [#allocation4], 11136
    $region13: #{tpu_custom_call.1} parent=1 // pred_fallthru
      _
    %vm28 = vcmask 257024
    %29 = vst.msk [vmem:[#allocation2] sm:$0xf] %vm28, 0.0
    %30 = vst.msk [vmem:[#allocation2 + $0x10] sm:$0xf] %vm28, 0.0
    %31 = vst.msk [vmem:[#allocation2 + $0xc] sm:$0xf] %vm28, 0.0
    %32 = vst.msk [vmem:[#allocation2 + $0x1c] sm:$0xf] %vm28, 0.0
    %v33 = vld [vmem:[%s0] sm:$0xff]
    %v34 = vld [vmem:[%s0 + $0x8] sm:$0xff]
    %v35 = vlaneseq
    %v36 = vand.u32 %v35, 127
    %37 = vset.pattern.permute.xlu0 0
    %38 = vperm.xlu0 %37, %v33
    %v39 = vpop.permute.xlu0 %38
    %40 = vset.pattern.permute.xlu0 0
    %41 = vperm.xlu0 %40, %v34
    %v42 = vpop.permute.xlu0 %41
    %vm43 = vcmp.eq.s32.totalorder %v36, %v39
    %vm44 = vcmp.eq.s32.totalorder %v36, %v42
    %v45 = vsel %vm43, 1, 0
    %v46 = vsel %vm44, 1, 0
    %v47 = vcvt.s32.f32 %v45
    %v48 = vcvt.s32.f32 %v46
    %v49 = vld [vmem:[#allocation3] sm:$0xff]
    %v50 = vld [vmem:[#allocation3 + $0x8] sm:$0xff]
    %vm51 = vcmask 130048
    %v53 = vsel %vm51, %v47, 0
    %v56 = vsel %vm51, %v48, 0
    %58 = vmatpush.msra.mxu0 0.0
    %59 = vmatpush.msra.mxu0 0.0
    %60 = vmatpush.msra.mxu0 0.0
    %61 = vmatpush.msra.mxu0 0.0
    %62 = vmatpush.msra.mxu0 0.0
    %63 = vmatpush.msra.mxu0 0.0
    %64 = vmatpush.msra.mxu0 0.0
    %65 = vmatpush.msra.mxu0 0.0
    %66 = vmatpush.msra.mxu0 0.0
    %67 = vmatpush.msra.mxu0 0.0
    %68 = vmatpush.msra.mxu0 0.0
    %69 = vmatpush.msra.mxu0 0.0
    %70 = vmatpush.msra.mxu0 0.0
    %71 = vmatpush.msra.mxu0 0.0
    %72 = vmatpush.msra.mxu0 %v50
    %73 = vmatpush.msra.mxu0 %v49
    %74 = vmatmul.f32.gmra.mxu0 %v53
    %v75 = vpop.f32.mrf.mxu0
    %v76 = vadd.f32 0.0, %v75
    %77 = vmatmul.f32.gmra.mxu0 %v56
    %v78 = vpop.f32.mrf.mxu0
    %v79 = vadd.f32 0.0, %v78
    %80 = vdwg.mxu0
    %vm81 = vcmask 261120
    %82 = vst.msk [vmem:[#allocation2 + $0x4] sm:$0xff] %vm81, %v76
    %83 = vst.msk [vmem:[#allocation2 + $0x14] sm:$0xff] %vm81, %v79
    %v84 = vld [vmem:[#allocation2] sm:$0xff]
    %v85 = vld [vmem:[#allocation2 + $0x8] sm:$0xff]
    %v86 = vld [vmem:[#allocation2 + $0x10] sm:$0xff]
    %v87 = vld [vmem:[#allocation2 + $0x18] sm:$0xff]
    %vm92 = vcmask 1046528
    %v93 = vrot.slane %v84, 1
    %v94 = vrot.slane %v85, 1
    %v95 = vsel %vm92, %v93, %v94
    %v96 = vrot.slane %v86, 1
    %v97 = vrot.slane %v87, 1
    %v98 = vsel %vm92, %v96, %v97
    %99 = vrot.lane.b32.xlu0 %v95, 32
    %v100 = vpop.permute.xlu0 %99
    %101 = vrot.lane.b32.xlu0 %v98, 32
    %v102 = vpop.permute.xlu0 %101
    %vm105 = vcmask 1045504
    %v106 = vrot.slane %v84, 2
    %v107 = vrot.slane %v85, 2
    %v108 = vsel %vm105, %v106, %v107
    %v109 = vrot.slane %v86, 2
    %v110 = vrot.slane %v87, 2
    %v111 = vsel %vm105, %v109, %v110
    %112 = vrot.lane.b32.xlu0 %v108, 64
    %v113 = vpop.permute.xlu0 %112
    %114 = vrot.lane.b32.xlu0 %v111, 64
    %v115 = vpop.permute.xlu0 %114
    %vm118 = vcmask 1044480
    %v119 = vrot.slane %v84, 3
    %v120 = vrot.slane %v85, 3
    %v121 = vsel %vm118, %v119, %v120
    %v122 = vrot.slane %v86, 3
    %v123 = vrot.slane %v87, 3
    %v124 = vsel %vm118, %v122, %v123
    %125 = vrot.lane.b32.xlu0 %v121, 96
    %v126 = vpop.permute.xlu0 %125
    %127 = vrot.lane.b32.xlu0 %v124, 96
    %v128 = vpop.permute.xlu0 %127
    %vm131 = vcmask 1043456
    %v132 = vrot.slane %v84, 4
    %v133 = vrot.slane %v85, 4
    %v134 = vsel %vm131, %v132, %v133
    %v135 = vrot.slane %v86, 4
    %v136 = vrot.slane %v87, 4
    %v137 = vsel %vm131, %v135, %v136
    %vm140 = vcmask 1042432
    %v141 = vrot.slane %v84, 5
    %v142 = vrot.slane %v85, 5
    %v143 = vsel %vm140, %v141, %v142
    %v144 = vrot.slane %v86, 5
    %v145 = vrot.slane %v87, 5
    %v146 = vsel %vm140, %v144, %v145
    %147 = vrot.lane.b32.xlu0 %v143, 32
    %v148 = vpop.permute.xlu0 %147
    %149 = vrot.lane.b32.xlu0 %v146, 32
    %v150 = vpop.permute.xlu0 %149
    %vm153 = vcmask 1041408
    %v154 = vrot.slane %v84, 6
    %v155 = vrot.slane %v85, 6
    %v156 = vsel %vm153, %v154, %v155
    %v157 = vrot.slane %v86, 6
    %v158 = vrot.slane %v87, 6
    %v159 = vsel %vm153, %v157, %v158
    %160 = vrot.lane.b32.xlu0 %v156, 64
    %v161 = vpop.permute.xlu0 %160
    %162 = vrot.lane.b32.xlu0 %v159, 64
    %v163 = vpop.permute.xlu0 %162
    %vm166 = vcmask 1040384
    %v167 = vrot.slane %v84, 7
    %v168 = vrot.slane %v85, 7
    %v169 = vsel %vm166, %v167, %v168
    %v170 = vrot.slane %v86, 7
    %v171 = vrot.slane %v87, 7
    %v172 = vsel %vm166, %v170, %v171
    %173 = vrot.lane.b32.xlu0 %v169, 96
    %v174 = vpop.permute.xlu0 %173
    %175 = vrot.lane.b32.xlu0 %v172, 96
    %v176 = vpop.permute.xlu0 %175
    %v179 = vsel %vm81, %v84, %v100
    %v180 = vsel %vm81, %v86, %v102
    %vm181 = vcmask 523264
    %v182 = vsel %vm181, %v179, %v113
    %v183 = vsel %vm181, %v180, %v115
    %vm184 = vcmask 785408
    %v185 = vsel %vm184, %v182, %v126
    %v186 = vsel %vm184, %v183, %v128
    %v187 = vsel %vm81, %v134, %v148
    %v188 = vsel %vm81, %v137, %v150
    %v189 = vsel %vm181, %v187, %v161
    %v190 = vsel %vm181, %v188, %v163
    %v191 = vsel %vm184, %v189, %v174
    %v192 = vsel %vm184, %v190, %v176
    %v193 = vld [vmem:[#allocation3 + $0x10] sm:$0xff]
    %v194 = vld [vmem:[#allocation3 + $0x18] sm:$0xff]
    %v195 = vld [vmem:[#allocation3 + $0x20] sm:$0xff]
    %v196 = vld [vmem:[#allocation3 + $0x28] sm:$0xff]
    %v197 = vld [vmem:[#allocation3 + $0x30] sm:$0xff]
    %v198 = vld [vmem:[#allocation3 + $0x38] sm:$0xff]
    %v199 = vld [vmem:[#allocation3 + $0x40] sm:$0xff]
    %v200 = vld [vmem:[#allocation3 + $0x48] sm:$0xff]
    %v201 = vld [vmem:[#allocation3 + $0x50] sm:$0xff]
    %v202 = vld [vmem:[#allocation3 + $0x58] sm:$0xff]
    %v203 = vld [vmem:[#allocation3 + $0x60] sm:$0xff]
    %v204 = vld [vmem:[#allocation3 + $0x68] sm:$0xff]
    %v205 = vld [vmem:[#allocation3 + $0x70] sm:$0xff]
    %v206 = vld [vmem:[#allocation3 + $0x78] sm:$0xff]
    %v207 = vld [vmem:[#allocation3 + $0x80] sm:$0xff]
    %v208 = vld [vmem:[#allocation3 + $0x88] sm:$0xff]
    %v209 = vld [vmem:[#allocation3 + $0x90] sm:$0xff]
    %v210 = vld [vmem:[#allocation3 + $0x98] sm:$0xff]
    %v211 = vld [vmem:[#allocation3 + $0xa0] sm:$0xff]
    %v212 = vld [vmem:[#allocation3 + $0xa8] sm:$0xff]
    %v213 = vld [vmem:[#allocation3 + $0xb0] sm:$0xff]
    %v214 = vld [vmem:[#allocation3 + $0xb8] sm:$0xff]
    %v215 = vld [vmem:[#allocation3 + $0xc0] sm:$0xff]
    %v216 = vld [vmem:[#allocation3 + $0xc8] sm:$0xff]
    %v217 = vld [vmem:[#allocation3 + $0xd0] sm:$0xff]
    %v218 = vld [vmem:[#allocation3 + $0xd8] sm:$0xff]
    %v219 = vld [vmem:[#allocation3 + $0xe0] sm:$0xff]
    %v220 = vld [vmem:[#allocation3 + $0xe8] sm:$0xff]
    %v221 = vld [vmem:[#allocation3 + $0xf0] sm:$0xff]
    %v222 = vld [vmem:[#allocation3 + $0xf8] sm:$0xff]
    %v223 = vld [vmem:[#allocation3 + $0x100] sm:$0xff]
    %v224 = vld [vmem:[#allocation3 + $0x108] sm:$0xff]
    %v225 = vld [vmem:[#allocation3 + $0x110] sm:$0xff]
    %v226 = vld [vmem:[#allocation3 + $0x118] sm:$0xff]
    %v227 = vld [vmem:[#allocation3 + $0x120] sm:$0xff]
    %v228 = vld [vmem:[#allocation3 + $0x128] sm:$0xff]
    %v229 = vld [vmem:[#allocation3 + $0x130] sm:$0x1]
    %v230 = vld [vmem:[#allocation3 + $0x131] sm:$0x1]
    %v231 = vsel %vm81, %v85, 0
    %v233 = vsel %vm81, %v87, 0
    %235 = vmatpush.msra.mxu0 %v208
    %236 = vmatpush.msra.mxu0 %v207
    %237 = vmatpush.msra.mxu0 %v206
    %238 = vmatpush.msra.mxu0 %v205
    %239 = vmatpush.msra.mxu0 %v204
    %240 = vmatpush.msra.mxu0 %v203
    %241 = vmatpush.msra.mxu0 %v202
    %242 = vmatpush.msra.mxu0 %v201
    %243 = vmatpush.msra.mxu0 %v200
    %244 = vmatpush.msra.mxu0 %v199
    %245 = vmatpush.msra.mxu0 %v198
    %246 = vmatpush.msra.mxu0 %v197
    %247 = vmatpush.msra.mxu0 %v196
    %248 = vmatpush.msra.mxu0 %v195
    %249 = vmatpush.msra.mxu0 %v194
    %250 = vmatpush.msra.mxu0 %v193
    %251 = vmatmul.f32.gmra.mxu0 %v185
    %v252 = vpop.f32.mrf.mxu0
    %v253 = vadd.f32 0.0, %v252
    %254 = vmatmul.f32.gmra.mxu0 %v186
    %v255 = vpop.f32.mrf.mxu0
    %v256 = vadd.f32 0.0, %v255
    %257 = vdwg.mxu0
    %258 = vmatpush.msra.mxu0 %v224
    %259 = vmatpush.msra.mxu0 %v223
    %260 = vmatpush.msra.mxu0 %v222
    %261 = vmatpush.msra.mxu0 %v221
    %262 = vmatpush.msra.mxu0 %v220
    %263 = vmatpush.msra.mxu0 %v219
    %264 = vmatpush.msra.mxu0 %v218
    %265 = vmatpush.msra.mxu0 %v217
    %266 = vmatpush.msra.mxu0 %v216
    %267 = vmatpush.msra.mxu0 %v215
    %268 = vmatpush.msra.mxu0 %v214
    %269 = vmatpush.msra.mxu0 %v213
    %270 = vmatpush.msra.mxu0 %v212
    %271 = vmatpush.msra.mxu0 %v211
    %272 = vmatpush.msra.mxu0 %v210
    %273 = vmatpush.msra.mxu0 %v209
    %274 = vmatmul.f32.gmra.mxu0 %v191
    %v275 = vpop.f32.mrf.mxu0
    %v276 = vadd.f32 %v253, %v275
    %277 = vmatmul.f32.gmra.mxu0 %v192
    %v278 = vpop.f32.mrf.mxu0
    %v279 = vadd.f32 %v256, %v278
    %280 = vdwg.mxu0
    %281 = vmatpush.msra.mxu0 0.0
    %282 = vmatpush.msra.mxu0 0.0
    %283 = vmatpush.msra.mxu0 0.0
    %284 = vmatpush.msra.mxu0 0.0
    %285 = vmatpush.msra.mxu0 0.0
    %286 = vmatpush.msra.mxu0 0.0
    %287 = vmatpush.msra.mxu0 0.0
    %288 = vmatpush.msra.mxu0 0.0
    %289 = vmatpush.msra.mxu0 0.0
    %290 = vmatpush.msra.mxu0 0.0
    %291 = vmatpush.msra.mxu0 0.0
    %292 = vmatpush.msra.mxu0 0.0
    %293 = vmatpush.msra.mxu0 %v228
    %294 = vmatpush.msra.mxu0 %v227
    %295 = vmatpush.msra.mxu0 %v226
    %296 = vmatpush.msra.mxu0 %v225
    %297 = vmatmul.f32.gmra.mxu0 %v231
    %v298 = vpop.f32.mrf.mxu0
    %v299 = vadd.f32 %v276, %v298
    %300 = vmatmul.f32.gmra.mxu0 %v233
    %v301 = vpop.f32.mrf.mxu0
    %v302 = vadd.f32 %v279, %v301
    %303 = vdwg.mxu0
    %v304 = vperm.slane %v229, 0
    %v305 = vmul.f32 %v299, %v304
    %v306 = vmul.f32 %v302, %v304
    %v307 = vperm.slane %v230, 0
    %v308 = vadd.f32 %v305, %v307
    %v309 = vadd.f32 %v306, %v307
    %vm310 = vcmp.gt.f32.partialorder %v308, 0.0
    %vm311 = vcmp.gt.f32.partialorder %v309, 0.0
    %v312 = vmul.f32 %v308, 0.3
    %v313 = vmul.f32 %v309, 0.3
    %v314 = vsel %vm310, %v308, %v312
    %v315 = vsel %vm311, %v309, %v313
    %vm316 = vcmask 64512
    %317 = vst.msk [vmem:[#allocation2 + $0x4] sm:$0xff] %vm316, %v314
    %318 = vst.msk [vmem:[#allocation2 + $0x14] sm:$0xff] %vm316, %v315
    %v319 = vld [vmem:[#allocation2] sm:$0xff]
    %v320 = vld [vmem:[#allocation2 + $0x8] sm:$0xff]
    %v321 = vld [vmem:[#allocation2 + $0x10] sm:$0xff]
    %v322 = vld [vmem:[#allocation2 + $0x18] sm:$0xff]
    %v327 = vrot.slane %v319, 1
    %v328 = vrot.slane %v320, 1
    %v329 = vsel %vm92, %v327, %v328
    %v330 = vrot.slane %v321, 1
    %v331 = vrot.slane %v322, 1
    %v332 = vsel %vm92, %v330, %v331
    %333 = vrot.lane.b32.xlu0 %v329, 8
    %v334 = vpop.permute.xlu0 %333
    %335 = vrot.lane.b32.xlu0 %v332, 8
    %v336 = vpop.permute.xlu0 %335
    %v339 = vrot.slane %v319, 2
    %v340 = vrot.slane %v320, 2
    %v341 = vsel %vm105, %v339, %v340
    %v342 = vrot.slane %v321, 2
    %v343 = vrot.slane %v322, 2
    %v344 = vsel %vm105, %v342, %v343
    %345 = vrot.lane.b32.xlu0 %v341, 16
    %v346 = vpop.permute.xlu0 %345
    %347 = vrot.lane.b32.xlu0 %v344, 16
    %v348 = vpop.permute.xlu0 %347
    %v351 = vrot.slane %v319, 3
    %v352 = vrot.slane %v320, 3
    %v353 = vsel %vm118, %v351, %v352
    %v354 = vrot.slane %v321, 3
    %v355 = vrot.slane %v322, 3
    %v356 = vsel %vm118, %v354, %v355
    %357 = vrot.lane.b32.xlu0 %v353, 24
    %v358 = vpop.permute.xlu0 %357
    %359 = vrot.lane.b32.xlu0 %v356, 24
    %v360 = vpop.permute.xlu0 %359
    %v363 = vrot.slane %v319, 4
    %v364 = vrot.slane %v320, 4
    %v365 = vsel %vm131, %v363, %v364
    %v366 = vrot.slane %v321, 4
    %v367 = vrot.slane %v322, 4
    %v368 = vsel %vm131, %v366, %v367
    %369 = vrot.lane.b32.xlu0 %v365, 32
    %v370 = vpop.permute.xlu0 %369
    %371 = vrot.lane.b32.xlu0 %v368, 32
    %v372 = vpop.permute.xlu0 %371
    %v375 = vrot.slane %v319, 5
    %v376 = vrot.slane %v320, 5
    %v377 = vsel %vm140, %v375, %v376
    %v378 = vrot.slane %v321, 5
    %v379 = vrot.slane %v322, 5
    %v380 = vsel %vm140, %v378, %v379
    %381 = vrot.lane.b32.xlu0 %v377, 40
    %v382 = vpop.permute.xlu0 %381
    %383 = vrot.lane.b32.xlu0 %v380, 40
    %v384 = vpop.permute.xlu0 %383
    %v387 = vrot.slane %v319, 6
    %v388 = vrot.slane %v320, 6
    %v389 = vsel %vm153, %v387, %v388
    %v390 = vrot.slane %v321, 6
    %v391 = vrot.slane %v322, 6
    %v392 = vsel %vm153, %v390, %v391
    %393 = vrot.lane.b32.xlu0 %v389, 48
    %v394 = vpop.permute.xlu0 %393
    %395 = vrot.lane.b32.xlu0 %v392, 48
    %v396 = vpop.permute.xlu0 %395
    %v399 = vrot.slane %v319, 7
    %v400 = vrot.slane %v320, 7
    %v401 = vsel %vm166, %v399, %v400
    %v402 = vrot.slane %v321, 7
    %v403 = vrot.slane %v322, 7
    %v404 = vsel %vm166, %v402, %v403
    %405 = vrot.lane.b32.xlu0 %v401, 56
    %v406 = vpop.permute.xlu0 %405
    %407 = vrot.lane.b32.xlu0 %v404, 56
    %v408 = vpop.permute.xlu0 %407
    %411 = vrot.lane.b32.xlu0 %v320, 64
    %v412 = vpop.permute.xlu0 %411
    %413 = vrot.lane.b32.xlu0 %v322, 64
    %v414 = vpop.permute.xlu0 %413
    %v417 = vsel %vm316, %v319, %v334
    %v418 = vsel %vm316, %v321, %v336
    %v419 = vsel %vm51, %v417, %v346
    %v420 = vsel %vm51, %v418, %v348
    %vm421 = vcmask 195584
    %v422 = vsel %vm421, %v419, %v358
    %v423 = vsel %vm421, %v420, %v360
    %v424 = vsel %vm81, %v422, %v370
    %v425 = vsel %vm81, %v423, %v372
    %vm426 = vcmask 326656
    %v427 = vsel %vm426, %v424, %v382
    %v428 = vsel %vm426, %v425, %v384
    %vm429 = vcmask 392192
    %v430 = vsel %vm429, %v427, %v394
    %v431 = vsel %vm429, %v428, %v396
    %vm432 = vcmask 457728
    %v433 = vsel %vm432, %v430, %v406
    %v434 = vsel %vm432, %v431, %v408
    %v435 = vsel %vm181, %v433, %v412
    %v436 = vsel %vm181, %v434, %v414
    %v437 = vld [vmem:[#allocation3 + $0x138] sm:$0xff]
    %v438 = vld [vmem:[#allocation3 + $0x140] sm:$0xff]
    %v439 = vld [vmem:[#allocation3 + $0x148] sm:$0xff]
    %v440 = vld [vmem:[#allocation3 + $0x150] sm:$0xff]
    %v441 = vld [vmem:[#allocation3 + $0x158] sm:$0xff]
    %v442 = vld [vmem:[#allocation3 + $0x160] sm:$0xff]
    %v443 = vld [vmem:[#allocation3 + $0x168] sm:$0xff]
    %v444 = vld [vmem:[#allocation3 + $0x170] sm:$0xff]
    %v445 = vld [vmem:[#allocation3 + $0x178] sm:$0xff]
    %v446 = vld [vmem:[#allocation3 + $0x180] sm:$0x1]
    %v447 = vld [vmem:[#allocation3 + $0x181] sm:$0x1]
    %vm448 = vcmask 588800
    %v450 = vsel %vm448, %v435, 0
    %v453 = vsel %vm448, %v436, 0
    %455 = vmatpush.msra.mxu0 0.0
    %456 = vmatpush.msra.mxu0 0.0
    %457 = vmatpush.msra.mxu0 0.0
    %458 = vmatpush.msra.mxu0 0.0
    %459 = vmatpush.msra.mxu0 0.0
    %460 = vmatpush.msra.mxu0 0.0
    %461 = vmatpush.msra.mxu0 0.0
    %462 = vmatpush.msra.mxu0 %v445
    %463 = vmatpush.msra.mxu0 %v444
    %464 = vmatpush.msra.mxu0 %v443
    %465 = vmatpush.msra.mxu0 %v442
    %466 = vmatpush.msra.mxu0 %v441
    %467 = vmatpush.msra.mxu0 %v440
    %468 = vmatpush.msra.mxu0 %v439
    %469 = vmatpush.msra.mxu0 %v438
    %470 = vmatpush.msra.mxu0 %v437
    %471 = vmatmul.f32.gmra.mxu0 %v450
    %v472 = vpop.f32.mrf.mxu0
    %v473 = vadd.f32 0.0, %v472
    %474 = vmatmul.f32.gmra.mxu0 %v453
    %v475 = vpop.f32.mrf.mxu0
    %v476 = vadd.f32 0.0, %v475
    %477 = vdwg.mxu0
    %v478 = vperm.slane %v446, 0
    %v479 = vmul.f32 %v473, %v478
    %v480 = vmul.f32 %v476, %v478
    %v481 = vperm.slane %v447, 0
    %v482 = vadd.f32 %v479, %v481
    %v483 = vadd.f32 %v480, %v481
    %vm484 = vcmp.gt.f32.partialorder %v482, 0.0
    %vm485 = vcmp.gt.f32.partialorder %v483, 0.0
    %v486 = vmul.f32 %v482, 0.3
    %v487 = vmul.f32 %v483, 0.3
    %v488 = vsel %vm484, %v482, %v486
    %v489 = vsel %vm485, %v483, %v487
    %490 = vst.msk [vmem:[#allocation2 + $0x4] sm:$0xff] %vm51, %v488
    %491 = vst.msk [vmem:[#allocation2 + $0x14] sm:$0xff] %vm51, %v489
    %v492 = vld [vmem:[#allocation2] sm:$0xff]
    %v493 = vld [vmem:[#allocation2 + $0x8] sm:$0xff]
    %v494 = vld [vmem:[#allocation2 + $0x10] sm:$0xff]
    %v495 = vld [vmem:[#allocation2 + $0x18] sm:$0xff]
    %v500 = vrot.slane %v492, 1
    %v501 = vrot.slane %v493, 1
    %v502 = vsel %vm92, %v500, %v501
    %v503 = vrot.slane %v494, 1
    %v504 = vrot.slane %v495, 1
    %v505 = vsel %vm92, %v503, %v504
    %506 = vrot.lane.b32.xlu0 %v502, 16
    %v507 = vpop.permute.xlu0 %506
    %508 = vrot.lane.b32.xlu0 %v505, 16
    %v509 = vpop.permute.xlu0 %508
    %v512 = vrot.slane %v492, 2
    %v513 = vrot.slane %v493, 2
    %v514 = vsel %vm105, %v512, %v513
    %v515 = vrot.slane %v494, 2
    %v516 = vrot.slane %v495, 2
    %v517 = vsel %vm105, %v515, %v516
    %518 = vrot.lane.b32.xlu0 %v514, 32
    %v519 = vpop.permute.xlu0 %518
    %520 = vrot.lane.b32.xlu0 %v517, 32
    %v521 = vpop.permute.xlu0 %520
    %v524 = vrot.slane %v492, 3
    %v525 = vrot.slane %v493, 3
    %v526 = vsel %vm118, %v524, %v525
    %v527 = vrot.slane %v494, 3
    %v528 = vrot.slane %v495, 3
    %v529 = vsel %vm118, %v527, %v528
    %530 = vrot.lane.b32.xlu0 %v526, 48
    %v531 = vpop.permute.xlu0 %530
    %532 = vrot.lane.b32.xlu0 %v529, 48
    %v533 = vpop.permute.xlu0 %532
    %v536 = vrot.slane %v492, 4
    %v537 = vrot.slane %v493, 4
    %v538 = vsel %vm131, %v536, %v537
    %v539 = vrot.slane %v494, 4
    %v540 = vrot.slane %v495, 4
    %v541 = vsel %vm131, %v539, %v540
    %542 = vrot.lane.b32.xlu0 %v538, 64
    %v543 = vpop.permute.xlu0 %542
    %544 = vrot.lane.b32.xlu0 %v541, 64
    %v545 = vpop.permute.xlu0 %544
    %v548 = vrot.slane %v492, 5
    %v549 = vrot.slane %v493, 5
    %v550 = vsel %vm140, %v548, %v549
    %v551 = vrot.slane %v494, 5
    %v552 = vrot.slane %v495, 5
    %v553 = vsel %vm140, %v551, %v552
    %554 = vrot.lane.b32.xlu0 %v550, 80
    %v555 = vpop.permute.xlu0 %554
    %556 = vrot.lane.b32.xlu0 %v553, 80
    %v557 = vpop.permute.xlu0 %556
    %v560 = vrot.slane %v492, 6
    %v561 = vrot.slane %v493, 6
    %v562 = vsel %vm153, %v560, %v561
    %v563 = vrot.slane %v494, 6
    %v564 = vrot.slane %v495, 6
    %v565 = vsel %vm153, %v563, %v564
    %566 = vrot.lane.b32.xlu0 %v562, 96
    %v567 = vpop.permute.xlu0 %566
    %568 = vrot.lane.b32.xlu0 %v565, 96
    %v569 = vpop.permute.xlu0 %568
    %v572 = vrot.slane %v492, 7
    %v573 = vrot.slane %v493, 7
    %v574 = vsel %vm166, %v572, %v573
    %v575 = vrot.slane %v494, 7
    %v576 = vrot.slane %v495, 7
    %v577 = vsel %vm166, %v575, %v576
    %578 = vrot.lane.b32.xlu0 %v574, 112
    %v579 = vpop.permute.xlu0 %578
    %580 = vrot.lane.b32.xlu0 %v577, 112
    %v581 = vpop.permute.xlu0 %580
    %v584 = vsel %vm51, %v492, %v507
    %v585 = vsel %vm51, %v494, %v509
    %v586 = vsel %vm81, %v584, %v519
    %v587 = vsel %vm81, %v585, %v521
    %v588 = vsel %vm429, %v586, %v531
    %v589 = vsel %vm429, %v587, %v533
    %v590 = vsel %vm181, %v588, %v543
    %v591 = vsel %vm181, %v589, %v545
    %vm592 = vcmask 654336
    %v593 = vsel %vm592, %v590, %v555
    %v594 = vsel %vm592, %v591, %v557
    %v595 = vsel %vm184, %v593, %v567
    %v596 = vsel %vm184, %v594, %v569
    %vm597 = vcmask 916480
    %v598 = vsel %vm597, %v595, %v579
    %v599 = vsel %vm597, %v596, %v581
    %v600 = vld [vmem:[#allocation3 + $0x188] sm:$0xff]
    %v601 = vld [vmem:[#allocation3 + $0x190] sm:$0xff]
    %v602 = vld [vmem:[#allocation3 + $0x198] sm:$0xff]
    %v603 = vld [vmem:[#allocation3 + $0x1a0] sm:$0xff]
    %v604 = vld [vmem:[#allocation3 + $0x1a8] sm:$0xff]
    %v605 = vld [vmem:[#allocation3 + $0x1b0] sm:$0xff]
    %v606 = vld [vmem:[#allocation3 + $0x1b8] sm:$0xff]
    %v607 = vld [vmem:[#allocation3 + $0x1c0] sm:$0xff]
    %v608 = vld [vmem:[#allocation3 + $0x1c8] sm:$0xff]
    %v609 = vld [vmem:[#allocation3 + $0x1d0] sm:$0xff]
    %v610 = vld [vmem:[#allocation3 + $0x1d8] sm:$0xff]
    %v611 = vld [vmem:[#allocation3 + $0x1e0] sm:$0xff]
    %v612 = vld [vmem:[#allocation3 + $0x1e8] sm:$0xff]
    %v613 = vld [vmem:[#allocation3 + $0x1f0] sm:$0xff]
    %v614 = vld [vmem:[#allocation3 + $0x1f8] sm:$0xff]
    %v615 = vld [vmem:[#allocation3 + $0x200] sm:$0xff]
    %v616 = vld [vmem:[#allocation3 + $0x208] sm:$0xff]
    %v617 = vld [vmem:[#allocation3 + $0x210] sm:$0xff]
    %v618 = vld [vmem:[#allocation3 + $0x218] sm:$0x1]
    %v619 = vld [vmem:[#allocation3 + $0x219] sm:$0x1]
    %v620 = vsel %vm51, %v493, 0
    %v622 = vsel %vm51, %v495, 0
    %624 = vmatpush.msra.mxu0 %v615
    %625 = vmatpush.msra.mxu0 %v614
    %626 = vmatpush.msra.mxu0 %v613
    %627 = vmatpush.msra.mxu0 %v612
    %628 = vmatpush.msra.mxu0 %v611
    %629 = vmatpush.msra.mxu0 %v610
    %630 = vmatpush.msra.mxu0 %v609
    %631 = vmatpush.msra.mxu0 %v608
    %632 = vmatpush.msra.mxu0 %v607
    %633 = vmatpush.msra.mxu0 %v606
    %634 = vmatpush.msra.mxu0 %v605
    %635 = vmatpush.msra.mxu0 %v604
    %636 = vmatpush.msra.mxu0 %v603
    %637 = vmatpush.msra.mxu0 %v602
    %638 = vmatpush.msra.mxu0 %v601
    %639 = vmatpush.msra.mxu0 %v600
    %640 = vmatmul.f32.gmra.mxu0 %v598
    %v641 = vpop.f32.mrf.mxu0
    %v642 = vadd.f32 0.0, %v641
    %643 = vmatmul.f32.gmra.mxu0 %v599
    %v644 = vpop.f32.mrf.mxu0
    %v645 = vadd.f32 0.0, %v644
    %646 = vdwg.mxu0
    %647 = vmatpush.msra.mxu0 0.0
    %648 = vmatpush.msra.mxu0 0.0
    %649 = vmatpush.msra.mxu0 0.0
    %650 = vmatpush.msra.mxu0 0.0
    %651 = vmatpush.msra.mxu0 0.0
    %652 = vmatpush.msra.mxu0 0.0
    %653 = vmatpush.msra.mxu0 0.0
    %654 = vmatpush.msra.mxu0 0.0
    %655 = vmatpush.msra.mxu0 0.0
    %656 = vmatpush.msra.mxu0 0.0
    %657 = vmatpush.msra.mxu0 0.0
    %658 = vmatpush.msra.mxu0 0.0
    %659 = vmatpush.msra.mxu0 0.0
    %660 = vmatpush.msra.mxu0 0.0
    %661 = vmatpush.msra.mxu0 %v617
    %662 = vmatpush.msra.mxu0 %v616
    %663 = vmatmul.f32.gmra.mxu0 %v620
    %v664 = vpop.f32.mrf.mxu0
    %v665 = vadd.f32 %v642, %v664
    %666 = vmatmul.f32.gmra.mxu0 %v622
    %v667 = vpop.f32.mrf.mxu0
    %v668 = vadd.f32 %v645, %v667
    %669 = vdwg.mxu0
    %v670 = vperm.slane %v618, 0
    %v671 = vmul.f32 %v665, %v670
    %v672 = vmul.f32 %v668, %v670
    %v673 = vperm.slane %v619, 0
    %v674 = vadd.f32 %v671, %v673
    %v675 = vadd.f32 %v672, %v673
    %vm676 = vcmp.gt.f32.partialorder %v674, 0.0
    %vm677 = vcmp.gt.f32.partialorder %v675, 0.0
    %v678 = vmul.f32 %v674, 0.3
    %v679 = vmul.f32 %v675, 0.3
    %v680 = vsel %vm676, %v674, %v678
    %v681 = vsel %vm677, %v675, %v679
    %682 = vst.msk [vmem:[#allocation2 + $0x4] sm:$0xff] %vm51, %v680
    %683 = vst.msk [vmem:[#allocation2 + $0x14] sm:$0xff] %vm51, %v681
    %v684 = vld [vmem:[#allocation2] sm:$0xff]
    %v685 = vld [vmem:[#allocation2 + $0x8] sm:$0xff]
    %v686 = vld [vmem:[#allocation2 + $0x10] sm:$0xff]
    %v687 = vld [vmem:[#allocation2 + $0x18] sm:$0xff]
    %v692 = vrot.slane %v684, 1
    %v693 = vrot.slane %v685, 1
    %v694 = vsel %vm92, %v692, %v693
    %v695 = vrot.slane %v686, 1
    %v696 = vrot.slane %v687, 1
    %v697 = vsel %vm92, %v695, %v696
    %698 = vrot.lane.b32.xlu0 %v694, 16
    %v699 = vpop.permute.xlu0 %698
    %700 = vrot.lane.b32.xlu0 %v697, 16
    %v701 = vpop.permute.xlu0 %700
    %v704 = vrot.slane %v684, 2
    %v705 = vrot.slane %v685, 2
    %v706 = vsel %vm105, %v704, %v705
    %v707 = vrot.slane %v686, 2
    %v708 = vrot.slane %v687, 2
    %v709 = vsel %vm105, %v707, %v708
    %710 = vrot.lane.b32.xlu0 %v706, 32
    %v711 = vpop.permute.xlu0 %710
    %712 = vrot.lane.b32.xlu0 %v709, 32
    %v713 = vpop.permute.xlu0 %712
    %v716 = vrot.slane %v684, 3
    %v717 = vrot.slane %v685, 3
    %v718 = vsel %vm118, %v716, %v717
    %v719 = vrot.slane %v686, 3
    %v720 = vrot.slane %v687, 3
    %v721 = vsel %vm118, %v719, %v720
    %722 = vrot.lane.b32.xlu0 %v718, 48
    %v723 = vpop.permute.xlu0 %722
    %724 = vrot.lane.b32.xlu0 %v721, 48
    %v725 = vpop.permute.xlu0 %724
    %v728 = vrot.slane %v684, 4
    %v729 = vrot.slane %v685, 4
    %v730 = vsel %vm131, %v728, %v729
    %v731 = vrot.slane %v686, 4
    %v732 = vrot.slane %v687, 4
    %v733 = vsel %vm131, %v731, %v732
    %734 = vrot.lane.b32.xlu0 %v730, 64
    %v735 = vpop.permute.xlu0 %734
    %736 = vrot.lane.b32.xlu0 %v733, 64
    %v737 = vpop.permute.xlu0 %736
    %v740 = vrot.slane %v684, 5
    %v741 = vrot.slane %v685, 5
    %v742 = vsel %vm140, %v740, %v741
    %v743 = vrot.slane %v686, 5
    %v744 = vrot.slane %v687, 5
    %v745 = vsel %vm140, %v743, %v744
    %746 = vrot.lane.b32.xlu0 %v742, 80
    %v747 = vpop.permute.xlu0 %746
    %748 = vrot.lane.b32.xlu0 %v745, 80
    %v749 = vpop.permute.xlu0 %748
    %v752 = vrot.slane %v684, 6
    %v753 = vrot.slane %v685, 6
    %v754 = vsel %vm153, %v752, %v753
    %v755 = vrot.slane %v686, 6
    %v756 = vrot.slane %v687, 6
    %v757 = vsel %vm153, %v755, %v756
    %758 = vrot.lane.b32.xlu0 %v754, 96
    %v759 = vpop.permute.xlu0 %758
    %760 = vrot.lane.b32.xlu0 %v757, 96
    %v761 = vpop.permute.xlu0 %760
    %v764 = vrot.slane %v684, 7
    %v765 = vrot.slane %v685, 7
    %v766 = vsel %vm166, %v764, %v765
    %v767 = vrot.slane %v686, 7
    %v768 = vrot.slane %v687, 7
    %v769 = vsel %vm166, %v767, %v768
    %770 = vrot.lane.b32.xlu0 %v766, 112
    %v771 = vpop.permute.xlu0 %770
    %772 = vrot.lane.b32.xlu0 %v769, 112
    %v773 = vpop.permute.xlu0 %772
    %v776 = vsel %vm51, %v684, %v699
    %v777 = vsel %vm51, %v686, %v701
    %v778 = vsel %vm81, %v776, %v711
    %v779 = vsel %vm81, %v777, %v713
    %v780 = vsel %vm429, %v778, %v723
    %v781 = vsel %vm429, %v779, %v725
    %v782 = vsel %vm181, %v780, %v735
    %v783 = vsel %vm181, %v781, %v737
    %v784 = vsel %vm592, %v782, %v747
    %v785 = vsel %vm592, %v783, %v749
    %v786 = vsel %vm184, %v784, %v759
    %v787 = vsel %vm184, %v785, %v761
    %v788 = vsel %vm597, %v786, %v771
    %v789 = vsel %vm597, %v787, %v773
    %v790 = vld [vmem:[#allocation3 + $0x220] sm:$0xff]
    %v791 = vld [vmem:[#allocation3 + $0x228] sm:$0xff]
    %v792 = vld [vmem:[#allocation3 + $0x230] sm:$0xff]
    %v793 = vld [vmem:[#allocation3 + $0x238] sm:$0xff]
    %v794 = vld [vmem:[#allocation3 + $0x240] sm:$0xff]
    %v795 = vld [vmem:[#allocation3 + $0x248] sm:$0xff]
    %v796 = vld [vmem:[#allocation3 + $0x250] sm:$0xff]
    %v797 = vld [vmem:[#allocation3 + $0x258] sm:$0xff]
    %v798 = vld [vmem:[#allocation3 + $0x260] sm:$0xff]
    %v799 = vld [vmem:[#allocation3 + $0x268] sm:$0xff]
    %v800 = vld [vmem:[#allocation3 + $0x270] sm:$0xff]
    %v801 = vld [vmem:[#allocation3 + $0x278] sm:$0xff]
    %v802 = vld [vmem:[#allocation3 + $0x280] sm:$0xff]
    %v803 = vld [vmem:[#allocation3 + $0x288] sm:$0xff]
    %v804 = vld [vmem:[#allocation3 + $0x290] sm:$0xff]
    %v805 = vld [vmem:[#allocation3 + $0x298] sm:$0xff]
    %v806 = vld [vmem:[#allocation3 + $0x2a0] sm:$0xff]
    %v807 = vld [vmem:[#allocation3 + $0x2a8] sm:$0xff]
    %v808 = vld [vmem:[#allocation3 + $0x2b0] sm:$0x1]
    %v809 = vld [vmem:[#allocation3 + $0x2b1] sm:$0x1]
    %v810 = vsel %vm51, %v685, 0
    %v812 = vsel %vm51, %v687, 0
    %814 = vmatpush.msra.mxu0 %v805
    %815 = vmatpush.msra.mxu0 %v804
    %816 = vmatpush.msra.mxu0 %v803
    %817 = vmatpush.msra.mxu0 %v802
    %818 = vmatpush.msra.mxu0 %v801
    %819 = vmatpush.msra.mxu0 %v800
    %820 = vmatpush.msra.mxu0 %v799
    %821 = vmatpush.msra.mxu0 %v798
    %822 = vmatpush.msra.mxu0 %v797
    %823 = vmatpush.msra.mxu0 %v796
    %824 = vmatpush.msra.mxu0 %v795
    %825 = vmatpush.msra.mxu0 %v794
    %826 = vmatpush.msra.mxu0 %v793
    %827 = vmatpush.msra.mxu0 %v792
    %828 = vmatpush.msra.mxu0 %v791
    %829 = vmatpush.msra.mxu0 %v790
    %830 = vmatmul.f32.gmra.mxu0 %v788
    %v831 = vpop.f32.mrf.mxu0
    %v832 = vadd.f32 0.0, %v831
    %833 = vmatmul.f32.gmra.mxu0 %v789
    %v834 = vpop.f32.mrf.mxu0
    %v835 = vadd.f32 0.0, %v834
    %836 = vdwg.mxu0
    %837 = vmatpush.msra.mxu0 0.0
    %838 = vmatpush.msra.mxu0 0.0
    %839 = vmatpush.msra.mxu0 0.0
    %840 = vmatpush.msra.mxu0 0.0
    %841 = vmatpush.msra.mxu0 0.0
    %842 = vmatpush.msra.mxu0 0.0
    %843 = vmatpush.msra.mxu0 0.0
    %844 = vmatpush.msra.mxu0 0.0
    %845 = vmatpush.msra.mxu0 0.0
    %846 = vmatpush.msra.mxu0 0.0
    %847 = vmatpush.msra.mxu0 0.0
    %848 = vmatpush.msra.mxu0 0.0
    %849 = vmatpush.msra.mxu0 0.0
    %850 = vmatpush.msra.mxu0 0.0
    %851 = vmatpush.msra.mxu0 %v807
    %852 = vmatpush.msra.mxu0 %v806
    %853 = vmatmul.f32.gmra.mxu0 %v810
    %v854 = vpop.f32.mrf.mxu0
    %v855 = vadd.f32 %v832, %v854
    %856 = vmatmul.f32.gmra.mxu0 %v812
    %v857 = vpop.f32.mrf.mxu0
    %v858 = vadd.f32 %v835, %v857
    %859 = vdwg.mxu0
    %v860 = vperm.slane %v808, 0
    %v861 = vmul.f32 %v855, %v860
    %v862 = vmul.f32 %v858, %v860
    %v863 = vperm.slane %v809, 0
    %v864 = vadd.f32 %v861, %v863
    %v865 = vadd.f32 %v862, %v863
    %vm866 = vcmp.gt.f32.partialorder %v864, 0.0
    %vm867 = vcmp.gt.f32.partialorder %v865, 0.0
    %v868 = vmul.f32 %v864, 0.3
    %v869 = vmul.f32 %v865, 0.3
    %v870 = vsel %vm866, %v864, %v868
    %v871 = vsel %vm867, %v865, %v869
    %v874 = vrot.slane %v870, 4
    %v875 = vrot.slane %v871, 4
    %v876 = vperm.slane %v870, 0
    %v877 = vperm.slane %v874, 0
    %v878 = vperm.slane %v871, 0
    %v879 = vperm.slane %v875, 0
    %vm880 = vcmask 1041409
    %v881 = vsel %vm880, %v877, %v876
    %v882 = vsel %vm880, %v879, %v878
    %v885 = vperm.slane %v870, 1
    %v886 = vperm.slane %v874, 1
    %v887 = vperm.slane %v871, 1
    %v888 = vperm.slane %v875, 1
    %v889 = vsel %vm880, %v886, %v885
    %v890 = vsel %vm880, %v888, %v887
    %891 = vrot.lane.b32.xlu0 %v889, 32
    %v892 = vpop.permute.xlu0 %891
    %893 = vrot.lane.b32.xlu0 %v890, 32
    %v894 = vpop.permute.xlu0 %893
    %v897 = vperm.slane %v870, 2
    %v898 = vperm.slane %v874, 2
    %v899 = vperm.slane %v871, 2
    %v900 = vperm.slane %v875, 2
    %v901 = vsel %vm880, %v898, %v897
    %v902 = vsel %vm880, %v900, %v899
    %903 = vrot.lane.b32.xlu0 %v901, 64
    %v904 = vpop.permute.xlu0 %903
    %905 = vrot.lane.b32.xlu0 %v902, 64
    %v906 = vpop.permute.xlu0 %905
    %v909 = vperm.slane %v870, 3
    %v910 = vperm.slane %v874, 3
    %v911 = vperm.slane %v871, 3
    %v912 = vperm.slane %v875, 3
    %v913 = vsel %vm880, %v910, %v909
    %v914 = vsel %vm880, %v912, %v911
    %915 = vrot.lane.b32.xlu0 %v913, 96
    %v916 = vpop.permute.xlu0 %915
    %917 = vrot.lane.b32.xlu0 %v914, 96
    %v918 = vpop.permute.xlu0 %917
    %v921 = vsel %vm81, %v881, %v892
    %v922 = vsel %vm81, %v882, %v894
    %v923 = vsel %vm181, %v921, %v904
    %v924 = vsel %vm181, %v922, %v906
    %v925 = vsel %vm184, %v923, %v916
    %v926 = vsel %vm184, %v924, %v918
    %927 = vst [vmem:[#allocation6] sm:$0x3] %v925
    %928 = vst [vmem:[#allocation6 + $0x2] sm:$0x3] %v926
    // Predicated region
    $region14: #{tpu_custom_call.1} parent=1 // pred_check
      _
    $region15: #{tpu_custom_call.1} parent=1 // pred_check_branch
      %930 = sbr.rel (0) target = $region17
    $region16: #{tpu_custom_call.1} parent=1 // pred_region
      %932 = vsyncadd [#allocation5], 0
      %s933 = sshll.u32 [#allocation6], 4
      %s934 = int_to_ptr.vmem [resolvable:$true] %s933
      %s935 = sshll.u32 %s2, 4
      %s936 = int_to_ptr.hbm [resolvable:$true] %s935
      %941 = dma.vmem_to_hbm [thread:$0]  %s934, 64, %s936, [#allocation5], 32, 32, 2
    $region17: #{tpu_custom_call.1} parent=1 // pred_fallthru
      _
    // Predicated region
    $region18: #{tpu_custom_call.1} parent=1 // pred_check
      _
    $region19: #{tpu_custom_call.1} parent=1 // pred_check_branch
      %943 = sbr.rel (0) target = $region21
    $region20: #{tpu_custom_call.1} parent=1 // pred_region
      %945 = dma.done [#allocation5], 64
    $region21: #{tpu_custom_call.1} parent=1 // pred_fallthru
      _
    %946 = vsyncpa [#allocation4], 1
    %947 = vsyncpa [#allocation5], 1

</llo_original>
